<compile_context>
chip_gen: v7x
topology: tpu7x:2x2x1
jax: 0.10.0
libtpu: 0.0.40
codegen_flags: <defaults>
</compile_context>

<pallas_src>
import jax
import jax.numpy as jnp
from jax.experimental import pallas as pl
from jax.experimental.pallas import tpu as pltpu


def _critic_kernel(state_ref, action_ref, w1s_ref, w1a_ref, b1_ref,
                   w2_ref, b2_ref, w3_ref, b3_ref, q_ref):
    # fc1 with fused concat:  cat(s, a) @ W1  ==  s @ W1[:S] + a @ W1[S:]
    h1 = (jnp.dot(state_ref[...], w1s_ref[...], preferred_element_type=jnp.float32)
          + jnp.dot(action_ref[...], w1a_ref[...], preferred_element_type=jnp.float32)
          + b1_ref[...])
    h1 = jnp.maximum(h1, 0.0)                                   # (bB, H)

    # fc2 + ReLU
    h2 = jnp.dot(h1, w2_ref[...], preferred_element_type=jnp.float32) + b2_ref[...]
    h2 = jnp.maximum(h2, 0.0)                                   # (bB, H)

    # fc3: single output unit -> VPU mul + XLU lane reduce (skip the MXU),
    # scalar bias comes from SMEM.
    q = jnp.sum(h2 * w3_ref[...], axis=-1, keepdims=True) + b3_ref[0, 0]
    q_ref[...] = q.astype(q_ref.dtype)                          # (bB, 1)


def critic_forward(state, action, params, *, block_b=512):
    """Fused Critic forward: Q = fc3(relu(fc2(relu(fc1(cat(s, a))))))."""
    w1, b1, w2, b2, w3, b3 = params
    state = state.astype(jnp.float32)
    action = action.astype(jnp.float32)

    B, S = state.shape
    A = action.shape[1]
    H = w1.shape[1]

    # Split fc1 weight so the concat happens inside the kernel.
    w1_s = w1[:S]                      # (S, H)
    w1_a = w1[S:]                      # (A, H)
    w3_row = w3.reshape(1, H)          # (1, H) row for the VPU reduce
    b3_scalar = b3.reshape(1, 1).astype(jnp.float32)   # scalar in SMEM

    # Batch tile: full batch for small B, otherwise 512-row (8-aligned) blocks.
    block_b = B if B <= block_b else block_b
    grid = (pl.cdiv(B, block_b),)

    return pl.pallas_call(
        _critic_kernel,
        out_shape=jax.ShapeDtypeStruct((B, 1), jnp.float32),
        grid=grid,
        in_specs=[
            pl.BlockSpec((block_b, S), lambda i: (i, 0)),       # state tile
            pl.BlockSpec((block_b, A), lambda i: (i, 0)),       # action tile
            pl.BlockSpec((S, H), lambda i: (0, 0)),             # w1_s (resident)
            pl.BlockSpec((A, H), lambda i: (0, 0)),             # w1_a (resident)
            pl.BlockSpec((1, H), lambda i: (0, 0)),             # b1
            pl.BlockSpec((H, H), lambda i: (0, 0)),             # w2
            pl.BlockSpec((1, H), lambda i: (0, 0)),             # b2
            pl.BlockSpec((1, H), lambda i: (0, 0)),             # w3 row
            pl.BlockSpec(memory_space=pltpu.MemorySpace.SMEM),  # b3 scalar
        ],
        out_specs=pl.BlockSpec((block_b, 1), lambda i: (i, 0)),
        compiler_params=pltpu.CompilerParams(
            dimension_semantics=("parallel",),
        ),
    )(state, action, w1_s, w1_a, b1, w2, b2, w3_row, b3_scalar)


def init_critic_params(key, state_dim, action_dim, hidden_dim=256):
    """Deterministic init mimicking nn.Linear default (uniform ±1/sqrt(fan_in)).

    Weights stored (in_features, out_features); biases as (1, out_features).
    """
    in1 = state_dim + action_dim
    dims = [(in1, hidden_dim), (hidden_dim, hidden_dim), (hidden_dim, 1)]
    params = []
    for fan_in, fan_out in dims:
        key, kw, kb = jax.random.split(key, 3)
        bound = 1.0 / jnp.sqrt(jnp.float32(fan_in))
        w = jax.random.uniform(kw, (fan_in, fan_out), jnp.float32, -bound, bound)
        b = jax.random.uniform(kb, (1, fan_out), jnp.float32, -bound, bound)
        params.extend([w, b])
    return tuple(params)


def critic_forward_ref(state, action, params):
    """Pure-JAX reference for correctness checking."""
    w1, b1, w2, b2, w3, b3 = params
    x = jnp.concatenate([state, action], axis=1)
    h1 = jnp.maximum(x @ w1 + b1, 0.0)
    h2 = jnp.maximum(h1 @ w2 + b2, 0.0)
    return h2 @ w3 + b3


if __name__ == "__main__":
    key = jax.random.PRNGKey(0)

    # --- small test (no-grid-sized batch, matches the original module spec) ---
    B, state_dim, action_dim, hidden_dim = 4, 12, 4, 32
    k_params, k_state, k_action, key = jax.random.split(key, 4)
    params = init_critic_params(k_params, state_dim, action_dim, hidden_dim)
    state = jax.random.normal(k_state, (B, state_dim), jnp.float32)
    action = jax.random.normal(k_action, (B, action_dim), jnp.float32)

    q = jax.block_until_ready(critic_forward(state, action, params))
    q_ref = critic_forward_ref(state, action, params)
    assert q.shape == (B, 1), q.shape
    assert jnp.allclose(q, q_ref, atol=1e-4, rtol=1e-4), (q, q_ref)

    # --- larger batch exercising the batch grid (2 blocks of 512 rows) ---
    B2, sd2, ad2, hd2 = 1024, 24, 8, 256
    k_params2, k_state2, k_action2, key = jax.random.split(key, 4)
    params2 = init_critic_params(k_params2, sd2, ad2, hd2)
    state2 = jax.random.normal(k_state2, (B2, sd2), jnp.float32)
    action2 = jax.random.normal(k_action2, (B2, ad2), jnp.float32)

    q2 = jax.block_until_ready(critic_forward(state2, action2, params2))
    q2_ref = critic_forward_ref(state2, action2, params2)
    assert q2.shape == (B2, 1), q2.shape
    assert jnp.allclose(q2, q2_ref, atol=1e-3, rtol=1e-3), (q2, q2_ref)

    print("KERNEL_OK")
</pallas_src>

<mosaic_0001>
module attributes {stable_mosaic.version = 11 : i64} {
  func.func @_critic_kernel(%arg0: i32, %arg1: memref<4x12xf32, #tpu.memory_space<vmem>>, %arg2: memref<4x4xf32, #tpu.memory_space<vmem>>, %arg3: memref<12x32xf32, #tpu.memory_space<vmem>>, %arg4: memref<4x32xf32, #tpu.memory_space<vmem>>, %arg5: memref<1x32xf32, #tpu.memory_space<vmem>>, %arg6: memref<32x32xf32, #tpu.memory_space<vmem>>, %arg7: memref<1x32xf32, #tpu.memory_space<vmem>>, %arg8: memref<1x32xf32, #tpu.memory_space<vmem>>, %arg9: memref<1x1xf32, #tpu.memory_space<smem>>, %arg10: memref<4x1xf32, #tpu.memory_space<vmem>>) attributes {dimension_semantics = [#tpu.dimension_semantics<parallel>], iteration_bounds = array<i64: 1>, scalar_prefetch = 0 : i64, scratch_operands = 0 : i64, tpu.core_type = #tpu.core_type<tc>, window_params = [{transform_indices = @transform_0, window_bounds = array<i64: 4, 12>}, {transform_indices = @transform_1, window_bounds = array<i64: 4, 4>}, {pipeline_mode = #tpu.pipeline_mode<synchronous>, transform_indices = @transform_2, window_bounds = array<i64: 12, 32>}, {pipeline_mode = #tpu.pipeline_mode<synchronous>, transform_indices = @transform_3, window_bounds = array<i64: 4, 32>}, {pipeline_mode = #tpu.pipeline_mode<synchronous>, transform_indices = @transform_4, window_bounds = array<i64: 1, 32>}, {pipeline_mode = #tpu.pipeline_mode<synchronous>, transform_indices = @transform_5, window_bounds = array<i64: 32, 32>}, {pipeline_mode = #tpu.pipeline_mode<synchronous>, transform_indices = @transform_6, window_bounds = array<i64: 1, 32>}, {pipeline_mode = #tpu.pipeline_mode<synchronous>, transform_indices = @transform_7, window_bounds = array<i64: 1, 32>}, {transform_indices = @transform_8, window_bounds = array<i64: 1, 1>}, {transform_indices = @transform_9, window_bounds = array<i64: 4, 1>}]} {
    %c0 = arith.constant 0 : index
    %c0_0 = arith.constant 0 : index
    %0 = vector.load %arg1[%c0, %c0_0] : memref<4x12xf32, #tpu.memory_space<vmem>>, vector<4x12xf32>
    %c0_1 = arith.constant 0 : index
    %c0_2 = arith.constant 0 : index
    %1 = vector.load %arg3[%c0_1, %c0_2] : memref<12x32xf32, #tpu.memory_space<vmem>>, vector<12x32xf32>
    %cst = arith.constant dense<0.000000e+00> : vector<4x32xf32>
    %2 = tpu.matmul %0, %1, %cst {dimension_numbers = #tpu.dot_dimension_numbers<[1], [0], [0], [1], [0, 0, 1, 1], [], []>} : vector<4x12xf32>, vector<12x32xf32>, vector<4x32xf32> -> vector<4x32xf32>
    %c0_3 = arith.constant 0 : index
    %c0_4 = arith.constant 0 : index
    %3 = vector.load %arg2[%c0_3, %c0_4] : memref<4x4xf32, #tpu.memory_space<vmem>>, vector<4x4xf32>
    %c0_5 = arith.constant 0 : index
    %c0_6 = arith.constant 0 : index
    %4 = vector.load %arg4[%c0_5, %c0_6] : memref<4x32xf32, #tpu.memory_space<vmem>>, vector<4x32xf32>
    %cst_7 = arith.constant dense<0.000000e+00> : vector<4x32xf32>
    %5 = tpu.matmul %3, %4, %cst_7 {dimension_numbers = #tpu.dot_dimension_numbers<[1], [0], [0], [1], [0, 0, 1, 1], [], []>} : vector<4x4xf32>, vector<4x32xf32>, vector<4x32xf32> -> vector<4x32xf32>
    %6 = arith.addf %2, %5 : vector<4x32xf32>
    %c0_8 = arith.constant 0 : index
    %c0_9 = arith.constant 0 : index
    %7 = vector.load %arg5[%c0_8, %c0_9] : memref<1x32xf32, #tpu.memory_space<vmem>>, vector<1x32xf32>
    %8 = vector.broadcast %7 : vector<1x32xf32> to vector<4x32xf32>
    %9 = arith.addf %6, %8 : vector<4x32xf32>
    %cst_10 = arith.constant 0.000000e+00 : f32
    %10 = vector.broadcast %cst_10 : f32 to vector<4x32xf32>
    %11 = arith.maximumf %9, %10 : vector<4x32xf32>
    %c0_11 = arith.constant 0 : index
    %c0_12 = arith.constant 0 : index
    %12 = vector.load %arg6[%c0_11, %c0_12] : memref<32x32xf32, #tpu.memory_space<vmem>>, vector<32x32xf32>
    %cst_13 = arith.constant dense<0.000000e+00> : vector<4x32xf32>
    %13 = tpu.matmul %11, %12, %cst_13 {dimension_numbers = #tpu.dot_dimension_numbers<[1], [0], [0], [1], [0, 0, 1, 1], [], []>} : vector<4x32xf32>, vector<32x32xf32>, vector<4x32xf32> -> vector<4x32xf32>
    %c0_14 = arith.constant 0 : index
    %c0_15 = arith.constant 0 : index
    %14 = vector.load %arg7[%c0_14, %c0_15] : memref<1x32xf32, #tpu.memory_space<vmem>>, vector<1x32xf32>
    %15 = vector.broadcast %14 : vector<1x32xf32> to vector<4x32xf32>
    %16 = arith.addf %13, %15 : vector<4x32xf32>
    %cst_16 = arith.constant 0.000000e+00 : f32
    %17 = vector.broadcast %cst_16 : f32 to vector<4x32xf32>
    %18 = arith.maximumf %16, %17 : vector<4x32xf32>
    %c0_17 = arith.constant 0 : index
    %c0_18 = arith.constant 0 : index
    %19 = vector.load %arg8[%c0_17, %c0_18] : memref<1x32xf32, #tpu.memory_space<vmem>>, vector<1x32xf32>
    %20 = vector.broadcast %19 : vector<1x32xf32> to vector<4x32xf32>
    %21 = arith.mulf %18, %20 : vector<4x32xf32>
    %cst_19 = arith.constant dense<0.000000e+00> : vector<4xf32>
    %22 = vector.multi_reduction <add>, %21, %cst_19 [1] : vector<4x32xf32> to vector<4xf32>
    %23 = vector.shape_cast %22 : vector<4xf32> to vector<4x1xf32>
    %c0_20 = arith.constant 0 : index
    %c0_21 = arith.constant 0 : index
    %24 = memref.load %arg9[%c0_20, %c0_21] : memref<1x1xf32, #tpu.memory_space<smem>>
    %25 = vector.broadcast %24 : f32 to vector<4x1xf32>
    %26 = arith.addf %23, %25 : vector<4x1xf32>
    %c0_22 = arith.constant 0 : index
    %c0_23 = arith.constant 0 : index
    %27 = vector.load %arg10[%c0_22, %c0_23] : memref<4x1xf32, #tpu.memory_space<vmem>>, vector<4x1xf32>
    tpu.vector_store %arg10[%c0_22, %c0_23], %26 {strides = array<i32>} : memref<4x1xf32, #tpu.memory_space<vmem>>, vector<4x1xf32>,
    return
  }
  func.func @transform_0(%arg0: i32) -> (i32, i32) {
    %c0_i32 = arith.constant 0 : i32
    %c0_i32_0 = arith.constant 0 : i32
    return %arg0, %c0_i32 : i32, i32
  }
  func.func @transform_1(%arg0: i32) -> (i32, i32) {
    %c0_i32 = arith.constant 0 : i32
    %c0_i32_0 = arith.constant 0 : i32
    return %arg0, %c0_i32 : i32, i32
  }
  func.func @transform_2(%arg0: i32) -> (i32, i32) {
    %c0_i32 = arith.constant 0 : i32
    %c0_i32_0 = arith.constant 0 : i32
    %c0_i32_1 = arith.constant 0 : i32
    return %c0_i32, %c0_i32_0 : i32, i32
  }
  func.func @transform_3(%arg0: i32) -> (i32, i32) {
    %c0_i32 = arith.constant 0 : i32
    %c0_i32_0 = arith.constant 0 : i32
    %c0_i32_1 = arith.constant 0 : i32
    return %c0_i32, %c0_i32_0 : i32, i32
  }
  func.func @transform_4(%arg0: i32) -> (i32, i32) {
    %c0_i32 = arith.constant 0 : i32
    %c0_i32_0 = arith.constant 0 : i32
    %c0_i32_1 = arith.constant 0 : i32
    return %c0_i32, %c0_i32_0 : i32, i32
  }
  func.func @transform_5(%arg0: i32) -> (i32, i32) {
    %c0_i32 = arith.constant 0 : i32
    %c0_i32_0 = arith.constant 0 : i32
    %c0_i32_1 = arith.constant 0 : i32
    return %c0_i32, %c0_i32_0 : i32, i32
  }
  func.func @transform_6(%arg0: i32) -> (i32, i32) {
    %c0_i32 = arith.constant 0 : i32
    %c0_i32_0 = arith.constant 0 : i32
    %c0_i32_1 = arith.constant 0 : i32
    return %c0_i32, %c0_i32_0 : i32, i32
  }
  func.func @transform_7(%arg0: i32) -> (i32, i32) {
    %c0_i32 = arith.constant 0 : i32
    %c0_i32_0 = arith.constant 0 : i32
    %c0_i32_1 = arith.constant 0 : i32
    return %c0_i32, %c0_i32_0 : i32, i32
  }
  func.func @transform_8(%arg0: i32) -> (i32, i32) {
    %c0_i32 = arith.constant 0 : i32
    %c0_i32_0 = arith.constant 0 : i32
    %c0_i32_1 = arith.constant 0 : i32
    return %c0_i32, %c0_i32_0 : i32, i32
  }
  func.func @transform_9(%arg0: i32) -> (i32, i32) {
    %c0_i32 = arith.constant 0 : i32
    %c0_i32_0 = arith.constant 0 : i32
    return %arg0, %c0_i32 : i32, i32
  }
}

</mosaic_0001>

<llo_original>
// kernel: tpu_custom_call.1
$region0: #{tpu_custom_call.1}
  #allocation0 [shape = 'u32[]', space=smem, size = 0x4, offset = 0x4, fixed_abs, tag = 'smem constant byte address 0x4 - core index']
  #allocation1 [shape = 'u32[144,128]{1,0:T(1,128)}', space=vmem, size = 0x12000, scoped, tag = 'internal scratch']
  #allocation2 [shape = 'f32[1,1]{1,0:T(1,128)S(6)}', space=smem, size = 0x200, scoped, tag = 'scoped memory for tpu_custom_call.1']
  %s0 = inlined_call_operand.hbm [shape: f32[4,12], index: 0, kind: input, shape index: {}]
  %s1 = inlined_call_operand.vmem [shape: f32[4,4], index: 1, kind: input, shape index: {}]
  %s2 = inlined_call_operand.hbm [shape: f32[12,32], index: 2, kind: input, shape index: {}]
  %s3 = inlined_call_operand.vmem [shape: f32[4,32], index: 3, kind: input, shape index: {}]
  %s4 = inlined_call_operand.vmem [shape: f32[1,32], index: 4, kind: input, shape index: {}]
  %s5 = inlined_call_operand.hbm [shape: f32[32,32], index: 5, kind: input, shape index: {}]
  %s6 = inlined_call_operand.vmem [shape: f32[1,32], index: 6, kind: input, shape index: {}]
  %s7 = inlined_call_operand.vmem [shape: f32[1,32], index: 7, kind: input, shape index: {}]
  %s8 = inlined_call_operand.<no memory space> [shape: f32[1,1], index: 8, kind: input, shape index: {}]
  %s9 = inlined_call_operand.vmem [shape: f32[4,1], index: 9, kind: output, shape index: {}]
  %s10 = sld [smem:[#allocation0]]
  $region58: #{tpu_custom_call.1} parent=0
    _
  %s12 = ssub.s32 1, %s10
  %s13 = scalar_select 0, %s12, %s10
  %14 = sst [smem:[#allocation2]] %s8
  $region1: #{tpu_custom_call.1} parent=0
    #allocation3 [shape = 'u8[2048]{0}', space=vmem, size = 0x800, scoped, tag = 'input window, operand 0, single buffered']
    #allocation4 [shape = 's32[1]{0}', space=sflag, size = 0x4, scoped, tag = 'scoped memory for tpu_custom_call.1']
    #allocation5 [shape = 'u8[8192]{0}', space=vmem, size = 0x2000, scoped, tag = 'input window, operand 2, single buffered']
    #allocation6 [shape = 's32[1]{0}', space=sflag, size = 0x4, scoped, tag = 'scoped memory for tpu_custom_call.1']
    #allocation7 [shape = 'u8[16384]{0}', space=vmem, size = 0x4000, scoped, tag = 'input window, operand 5, single buffered']
    %15 = vsyncpa [#allocation4], 0
    %16 = vsyncpa [#allocation6], 0
    // Predicated region
    $region2: #{tpu_custom_call.1} parent=1 // pred_check
      _
    $region3: #{tpu_custom_call.1} parent=1 // pred_check_branch
      %18 = sbr.rel (0) target = $region5
    $region4: #{tpu_custom_call.1} parent=1 // pred_region
      %s20 = ssub.s32 64, 64
      %21 = vsyncadd [#allocation4], %s20
      %s23 = sshll.u32 [#allocation3], 4
      %s24 = int_to_ptr.vmem [resolvable:$true] %s23
      %26 = dma.hbm_to_vmem [thread:$0]  %s0, 64, %s24, [#allocation4]
    $region5: #{tpu_custom_call.1} parent=1 // pred_fallthru
      _
    // Predicated region
    $region6: #{tpu_custom_call.1} parent=1 // pred_check
      _
    $region7: #{tpu_custom_call.1} parent=1 // pred_check_branch
      %28 = sbr.rel (0) target = $region9
    $region8: #{tpu_custom_call.1} parent=1 // pred_region
      _
    $region9: #{tpu_custom_call.1} parent=1 // pred_fallthru
      _
    // Predicated region
    $region10: #{tpu_custom_call.1} parent=1 // pred_check
      _
    $region11: #{tpu_custom_call.1} parent=1 // pred_check_branch
      %30 = sbr.rel (0) target = $region13
    $region12: #{tpu_custom_call.1} parent=1 // pred_region
      %s32 = ssub.s32 256, 256
      %33 = vsyncadd [#allocation6], %s32
      %s34 = sshll.u32 [#allocation5], 4
      %s35 = int_to_ptr.vmem [resolvable:$true] %s34
      %40 = dma.hbm_to_vmem [thread:$0]  %s2, 256, %s35, [#allocation6], 128, 128, 8
    $region13: #{tpu_custom_call.1} parent=1 // pred_fallthru
      _
    // Predicated region
    $region14: #{tpu_custom_call.1} parent=1 // pred_check
      _
    $region15: #{tpu_custom_call.1} parent=1 // pred_check_branch
      %42 = sbr.rel (0) target = $region17
    $region16: #{tpu_custom_call.1} parent=1 // pred_region
      _
    $region17: #{tpu_custom_call.1} parent=1 // pred_fallthru
      _
    // Predicated region
    $region18: #{tpu_custom_call.1} parent=1 // pred_check
      _
    $region19: #{tpu_custom_call.1} parent=1 // pred_check_branch
      %44 = sbr.rel (0) target = $region21
    $region20: #{tpu_custom_call.1} parent=1 // pred_region
      _
    $region21: #{tpu_custom_call.1} parent=1 // pred_fallthru
      _
    // Predicated region
    $region22: #{tpu_custom_call.1} parent=1 // pred_check
      _
    $region23: #{tpu_custom_call.1} parent=1 // pred_check_branch
      %46 = sbr.rel (0) target = $region25
    $region24: #{tpu_custom_call.1} parent=1 // pred_region
      %s48 = ssub.s32 512, 512
      %49 = vsyncadd [#allocation6], %s48
      %s50 = sshll.u32 [#allocation7], 4
      %s51 = int_to_ptr.vmem [resolvable:$true] %s50
      %56 = dma.hbm_to_vmem [thread:$0]  %s5, 512, %s51, [#allocation6], 128, 128, 8
    $region25: #{tpu_custom_call.1} parent=1 // pred_fallthru
      _
    // Predicated region
    $region26: #{tpu_custom_call.1} parent=1 // pred_check
      _
    $region27: #{tpu_custom_call.1} parent=1 // pred_check_branch
      %58 = sbr.rel (0) target = $region29
    $region28: #{tpu_custom_call.1} parent=1 // pred_region
      _
    $region29: #{tpu_custom_call.1} parent=1 // pred_fallthru
      _
    // Predicated region
    $region30: #{tpu_custom_call.1} parent=1 // pred_check
      _
    $region31: #{tpu_custom_call.1} parent=1 // pred_check_branch
      %60 = sbr.rel (0) target = $region33
    $region32: #{tpu_custom_call.1} parent=1 // pred_region
      _
    $region33: #{tpu_custom_call.1} parent=1 // pred_fallthru
      _
    // Predicated region
    $region34: #{tpu_custom_call.1} parent=1 // pred_check
      _
    $region35: #{tpu_custom_call.1} parent=1 // pred_check_branch
      %62 = sbr.rel (0) target = $region37
    $region36: #{tpu_custom_call.1} parent=1 // pred_region
      _
    $region37: #{tpu_custom_call.1} parent=1 // pred_fallthru
      _
    // Predicated region
    $region38: #{tpu_custom_call.1} parent=1 // pred_check
      _
    $region39: #{tpu_custom_call.1} parent=1 // pred_check_branch
      %64 = sbr.rel (0) target = $region41
    $region40: #{tpu_custom_call.1} parent=1 // pred_region
      %65 = dma.done [#allocation4], 64
    $region41: #{tpu_custom_call.1} parent=1 // pred_fallthru
      _
    // Predicated region
    $region42: #{tpu_custom_call.1} parent=1 // pred_check
      _
    $region43: #{tpu_custom_call.1} parent=1 // pred_check_branch
      %67 = sbr.rel (0) target = $region45
    $region44: #{tpu_custom_call.1} parent=1 // pred_region
      %68 = dma.done [#allocation6], 256
    $region45: #{tpu_custom_call.1} parent=1 // pred_fallthru
      _
    // Predicated region
    $region46: #{tpu_custom_call.1} parent=1 // pred_check
      _
    $region47: #{tpu_custom_call.1} parent=1 // pred_check_branch
      %70 = sbr.rel (0) target = $region49
    $region48: #{tpu_custom_call.1} parent=1 // pred_region
      %71 = dma.done [#allocation6], 512
    $region49: #{tpu_custom_call.1} parent=1 // pred_fallthru
      _
    %v72 = vld [vmem:[#allocation3] sm:$0xf]
    %v73 = vld [vmem:[#allocation5] sm:$0xff]
    %v74 = vld [vmem:[#allocation5 + $0x8] sm:$0xf]
    %v75 = vld [vmem:[%s1] sm:$0xf]
    %v76 = vld [vmem:[%s3] sm:$0xf]
    %vm77 = vcmask 31744
    %v79 = vsel %vm77, %v75, 0
    %vm81 = vcmask 1043456
    %v83 = vsel %vm81, %v76, 0
    %85 = vmatprep.subr.mxu0 0.0
    %86 = vmatpush1.msra.mxu0 %v83
    %87 = vmatprep.subr.mxu0 0.0
    %88 = vmatpush1.msra.mxu0 0.0
    %89 = vmatprep.subr.mxu0 0.0
    %90 = vmatpush1.msra.mxu0 0.0
    %91 = vmatprep.subr.mxu0 0.0
    %92 = vmatpush1.msra.mxu0 0.0
    %93 = vmatprep.subr.mxu0 0.0
    %94 = vmatpush1.msra.mxu0 0.0
    %95 = vmatprep.subr.mxu0 0.0
    %96 = vmatpush1.msra.mxu0 0.0
    %97 = vmatprep.subr.mxu0 0.0
    %98 = vmatpush1.msra.mxu0 0.0
    %99 = vmatprep.subr.mxu0 0.0
    %100 = vmatpush1.msra.mxu0 0.0
    %101 = vmatprep.subr.mxu0 0.0
    %102 = vmatpush1.msra.mxu0 0.0
    %103 = vmatprep.subr.mxu0 0.0
    %104 = vmatpush1.msra.mxu0 0.0
    %105 = vmatprep.subr.mxu0 0.0
    %106 = vmatpush1.msra.mxu0 0.0
    %107 = vmatprep.subr.mxu0 0.0
    %108 = vmatpush1.msra.mxu0 0.0
    %109 = vmatprep.subr.mxu0 0.0
    %110 = vmatpush1.msra.mxu0 0.0
    %111 = vmatprep.subr.mxu0 0.0
    %112 = vmatpush1.msra.mxu0 0.0
    %113 = vmatprep.subr.mxu0 0.0
    %114 = vmatpush1.msra.mxu0 0.0
    %115 = vmatprep.subr.mxu0 0.0
    %116 = vmatpush1.msra.mxu0 0.0
    %117 = vmatprep.subr.mxu0 0.0
    %118 = vmatpush1.msra.mxu0 0.0
    %119 = vmatprep.subr.mxu0 0.0
    %120 = vmatpush1.msra.mxu0 0.0
    %121 = vmatprep.subr.mxu0 0.0
    %122 = vmatpush1.msra.mxu0 0.0
    %123 = vmatprep.subr.mxu0 0.0
    %124 = vmatpush1.msra.mxu0 0.0
    %125 = vmatprep.subr.mxu0 0.0
    %126 = vmatpush1.msra.mxu0 0.0
    %127 = vmatprep.subr.mxu0 0.0
    %128 = vmatpush1.msra.mxu0 0.0
    %129 = vmatprep.subr.mxu0 0.0
    %130 = vmatpush1.msra.mxu0 0.0
    %131 = vmatprep.subr.mxu0 0.0
    %132 = vmatpush1.msra.mxu0 0.0
    %133 = vmatprep.subr.mxu0 0.0
    %134 = vmatpush1.msra.mxu0 0.0
    %135 = vmatprep.subr.mxu0 0.0
    %136 = vmatpush1.msra.mxu0 0.0
    %137 = vmatprep.subr.mxu0 0.0
    %138 = vmatpush1.msra.mxu0 0.0
    %139 = vmatprep.subr.mxu0 0.0
    %140 = vmatpush1.msra.mxu0 0.0
    %141 = vmatprep.subr.mxu0 0.0
    %142 = vmatpush1.msra.mxu0 0.0
    %143 = vmatprep.subr.mxu0 0.0
    %144 = vmatpush1.msra.mxu0 0.0
    %145 = vmatprep.subr.mxu0 0.0
    %146 = vmatpush1.msra.mxu0 0.0
    %147 = vmatprep.subr.mxu0 0.0
    %148 = vmatpush1.msra.mxu0 0.0
    %149 = vmatprep.mubr.f32.mxu0 0.0
    %150 = vmatmul.mubr.f32.gmra.mrb[0].mxu0 %v79
    %v151 = vpop.f32.mrb[0].mxu0
    %v152 = vadd.f32 0.0, %v151
    %v153 = vpop.f32.mrb[0].mxu0
    %154 = vdwg.mxu0
    %vm155 = vcmask 97280
    %v157 = vsel %vm155, %v72, 0
    %v160 = vsel %vm81, %v74, 0
    %162 = vmatprep.subr.mxu0 0.0
    %163 = vmatpush1.msra.mxu0 %v73
    %164 = vmatprep.subr.mxu0 0.0
    %165 = vmatpush1.msra.mxu0 %v160
    %166 = vmatprep.subr.mxu0 0.0
    %167 = vmatpush1.msra.mxu0 0.0
    %168 = vmatprep.subr.mxu0 0.0
    %169 = vmatpush1.msra.mxu0 0.0
    %170 = vmatprep.subr.mxu0 0.0
    %171 = vmatpush1.msra.mxu0 0.0
    %172 = vmatprep.subr.mxu0 0.0
    %173 = vmatpush1.msra.mxu0 0.0
    %174 = vmatprep.subr.mxu0 0.0
    %175 = vmatpush1.msra.mxu0 0.0
    %176 = vmatprep.subr.mxu0 0.0
    %177 = vmatpush1.msra.mxu0 0.0
    %178 = vmatprep.subr.mxu0 0.0
    %179 = vmatpush1.msra.mxu0 0.0
    %180 = vmatprep.subr.mxu0 0.0
    %181 = vmatpush1.msra.mxu0 0.0
    %182 = vmatprep.subr.mxu0 0.0
    %183 = vmatpush1.msra.mxu0 0.0
    %184 = vmatprep.subr.mxu0 0.0
    %185 = vmatpush1.msra.mxu0 0.0
    %186 = vmatprep.subr.mxu0 0.0
    %187 = vmatpush1.msra.mxu0 0.0
    %188 = vmatprep.subr.mxu0 0.0
    %189 = vmatpush1.msra.mxu0 0.0
    %190 = vmatprep.subr.mxu0 0.0
    %191 = vmatpush1.msra.mxu0 0.0
    %192 = vmatprep.subr.mxu0 0.0
    %193 = vmatpush1.msra.mxu0 0.0
    %194 = vmatprep.subr.mxu0 0.0
    %195 = vmatpush1.msra.mxu0 0.0
    %196 = vmatprep.subr.mxu0 0.0
    %197 = vmatpush1.msra.mxu0 0.0
    %198 = vmatprep.subr.mxu0 0.0
    %199 = vmatpush1.msra.mxu0 0.0
    %200 = vmatprep.subr.mxu0 0.0
    %201 = vmatpush1.msra.mxu0 0.0
    %202 = vmatprep.subr.mxu0 0.0
    %203 = vmatpush1.msra.mxu0 0.0
    %204 = vmatprep.subr.mxu0 0.0
    %205 = vmatpush1.msra.mxu0 0.0
    %206 = vmatprep.subr.mxu0 0.0
    %207 = vmatpush1.msra.mxu0 0.0
    %208 = vmatprep.subr.mxu0 0.0
    %209 = vmatpush1.msra.mxu0 0.0
    %210 = vmatprep.subr.mxu0 0.0
    %211 = vmatpush1.msra.mxu0 0.0
    %212 = vmatprep.subr.mxu0 0.0
    %213 = vmatpush1.msra.mxu0 0.0
    %214 = vmatprep.subr.mxu0 0.0
    %215 = vmatpush1.msra.mxu0 0.0
    %216 = vmatprep.subr.mxu0 0.0
    %217 = vmatpush1.msra.mxu0 0.0
    %218 = vmatprep.subr.mxu0 0.0
    %219 = vmatpush1.msra.mxu0 0.0
    %220 = vmatprep.subr.mxu0 0.0
    %221 = vmatpush1.msra.mxu0 0.0
    %222 = vmatprep.subr.mxu0 0.0
    %223 = vmatpush1.msra.mxu0 0.0
    %224 = vmatprep.subr.mxu0 0.0
    %225 = vmatpush1.msra.mxu0 0.0
    %226 = vmatprep.mubr.f32.mxu0 0.0
    %227 = vmatmul.mubr.f32.gmra.mrb[0].mxu0 %v157
    %v228 = vpop.f32.mrb[0].mxu0
    %v229 = vadd.f32 %v152, %v228
    %v230 = vpop.f32.mrb[0].mxu0
    %231 = vdwg.mxu0
    %v232 = vld [vmem:[%s4] sm:$0x1]
    %v234 = vlaneseq
    %v235 = vshrl.u32 %v234, 7
    %v236 = vsub.s32 0, %v235
    %v237 = vrot.slane %v232, %v236
    %v239 = vadd.f32 %v229, %v237
    %v240 = vmax.f32 %v239, 0.0
    %v241 = vld [vmem:[#allocation7] sm:$0xff]
    %v242 = vld [vmem:[#allocation7 + $0x8] sm:$0xff]
    %v243 = vld [vmem:[#allocation7 + $0x10] sm:$0xff]
    %v244 = vld [vmem:[#allocation7 + $0x18] sm:$0xff]
    %v245 = vld [vmem:[%s6] sm:$0x1]
    %v247 = vlaneseq
    %v248 = vshrl.u32 %v247, 7
    %v249 = vsub.s32 0, %v248
    %v250 = vrot.slane %v245, %v249
    %vm252 = vcmask 261120
    %v254 = vsel %vm252, %v240, 0
    %256 = vmatprep.subr.mxu0 0.0
    %257 = vmatpush1.msra.mxu0 %v241
    %258 = vmatprep.subr.mxu0 0.0
    %259 = vmatpush1.msra.mxu0 %v242
    %260 = vmatprep.subr.mxu0 0.0
    %261 = vmatpush1.msra.mxu0 %v243
    %262 = vmatprep.subr.mxu0 0.0
    %263 = vmatpush1.msra.mxu0 %v244
    %264 = vmatprep.subr.mxu0 0.0
    %265 = vmatpush1.msra.mxu0 0.0
    %266 = vmatprep.subr.mxu0 0.0
    %267 = vmatpush1.msra.mxu0 0.0
    %268 = vmatprep.subr.mxu0 0.0
    %269 = vmatpush1.msra.mxu0 0.0
    %270 = vmatprep.subr.mxu0 0.0
    %271 = vmatpush1.msra.mxu0 0.0
    %272 = vmatprep.subr.mxu0 0.0
    %273 = vmatpush1.msra.mxu0 0.0
    %274 = vmatprep.subr.mxu0 0.0
    %275 = vmatpush1.msra.mxu0 0.0
    %276 = vmatprep.subr.mxu0 0.0
    %277 = vmatpush1.msra.mxu0 0.0
    %278 = vmatprep.subr.mxu0 0.0
    %279 = vmatpush1.msra.mxu0 0.0
    %280 = vmatprep.subr.mxu0 0.0
    %281 = vmatpush1.msra.mxu0 0.0
    %282 = vmatprep.subr.mxu0 0.0
    %283 = vmatpush1.msra.mxu0 0.0
    %284 = vmatprep.subr.mxu0 0.0
    %285 = vmatpush1.msra.mxu0 0.0
    %286 = vmatprep.subr.mxu0 0.0
    %287 = vmatpush1.msra.mxu0 0.0
    %288 = vmatprep.subr.mxu0 0.0
    %289 = vmatpush1.msra.mxu0 0.0
    %290 = vmatprep.subr.mxu0 0.0
    %291 = vmatpush1.msra.mxu0 0.0
    %292 = vmatprep.subr.mxu0 0.0
    %293 = vmatpush1.msra.mxu0 0.0
    %294 = vmatprep.subr.mxu0 0.0
    %295 = vmatpush1.msra.mxu0 0.0
    %296 = vmatprep.subr.mxu0 0.0
    %297 = vmatpush1.msra.mxu0 0.0
    %298 = vmatprep.subr.mxu0 0.0
    %299 = vmatpush1.msra.mxu0 0.0
    %300 = vmatprep.subr.mxu0 0.0
    %301 = vmatpush1.msra.mxu0 0.0
    %302 = vmatprep.subr.mxu0 0.0
    %303 = vmatpush1.msra.mxu0 0.0
    %304 = vmatprep.subr.mxu0 0.0
    %305 = vmatpush1.msra.mxu0 0.0
    %306 = vmatprep.subr.mxu0 0.0
    %307 = vmatpush1.msra.mxu0 0.0
    %308 = vmatprep.subr.mxu0 0.0
    %309 = vmatpush1.msra.mxu0 0.0
    %310 = vmatprep.subr.mxu0 0.0
    %311 = vmatpush1.msra.mxu0 0.0
    %312 = vmatprep.subr.mxu0 0.0
    %313 = vmatpush1.msra.mxu0 0.0
    %314 = vmatprep.subr.mxu0 0.0
    %315 = vmatpush1.msra.mxu0 0.0
    %316 = vmatprep.subr.mxu0 0.0
    %317 = vmatpush1.msra.mxu0 0.0
    %318 = vmatprep.subr.mxu0 0.0
    %319 = vmatpush1.msra.mxu0 0.0
    %320 = vmatprep.mubr.f32.mxu0 0.0
    %321 = vmatmul.mubr.f32.gmra.mrb[0].mxu0 %v254
    %v322 = vpop.f32.mrb[0].mxu0
    %v323 = vadd.f32 %v250, %v322
    %v324 = vpop.f32.mrb[0].mxu0
    %325 = vdwg.mxu0
    %v326 = vmax.f32 %v323, 0.0
    %v327 = vld [vmem:[%s7] sm:$0x1]
    %v329 = vlaneseq
    %v330 = vshrl.u32 %v329, 7
    %v331 = vsub.s32 0, %v330
    %v332 = vrot.slane %v327, %v331
    %v334 = vmul.f32 %v326, %v332
    %vm335 = vcmask 257024
    %v336 = vsel %vm335, %v334, 0.0
    %337 = vadd.xlane.f32.xlu0 %v336
    %v338 = vpop.xlane.xlu0 %337
    %s339 = sld [smem:[#allocation2]]
    %v340 = vstv %s339
    %v341 = vadd.f32 %v338, %v340
    %vm342 = vcmask 3072
    %343 = vst.msk [vmem:[%s9] sm:$0xf] %vm342, %v341
    // Predicated region
    $region50: #{tpu_custom_call.1} parent=1 // pred_check
      _
    $region51: #{tpu_custom_call.1} parent=1 // pred_check_branch
      %345 = sbr.rel (0) target = $region53
    $region52: #{tpu_custom_call.1} parent=1 // pred_region
      _
    $region53: #{tpu_custom_call.1} parent=1 // pred_fallthru
      _
    // Predicated region
    $region54: #{tpu_custom_call.1} parent=1 // pred_check
      _
    $region55: #{tpu_custom_call.1} parent=1 // pred_check_branch
      %347 = sbr.rel (0) target = $region57
    $region56: #{tpu_custom_call.1} parent=1 // pred_region
      _
    $region57: #{tpu_custom_call.1} parent=1 // pred_fallthru
      _
    %348 = vsyncpa [#allocation4], 1
    %349 = vsyncpa [#allocation6], 1

</llo_original>
